<compile_context>
chip_gen: v7x
topology: tpu7x:2x2x1
jax: 0.10.0
libtpu: 0.0.40
codegen_flags: <defaults>
</compile_context>

<pallas_src>
import jax
import jax.numpy as jnp
import numpy as np
from jax.experimental import pallas as pl
from jax.experimental.pallas import tpu as pltpu

TOPK = 10                               # matches `min(..., 10)` in the PyTorch reference
NEG_KEY = jnp.iinfo(jnp.int32).min      # key for inactive / already-selected points


def _topo_wass_kernel(dg_ref, wass_ref):
    # dg_ref: (1, 2, 2, P_pad, G_TILE)  [tile, diagram, birth/death, point, group]
    b1 = dg_ref[0, 0, 0]                 # (P_pad, G_TILE)
    d1 = dg_ref[0, 0, 1]
    b2 = dg_ref[0, 1, 0]
    d2 = dg_ref[0, 1, 1]
    Pp, Gt = b1.shape

    # point index along sublanes, packed into the key's low bits for a stable tie-break
    idx = jax.lax.broadcasted_iota(jnp.int32, (Pp, Gt), 0)
    nbits = max(1, (Pp - 1).bit_length())
    low = (1 << nbits) - 1               # static python int

    def make_keys(bb, dd):
        # active == not the all-zero (padding) row
        active = jnp.logical_or(bb != 0.0, dd != 0.0)                    # (Pp, Gt)
        n = jnp.sum(active.astype(jnp.int32), axis=0, keepdims=True)     # (1, Gt)
        pers = dd - bb
        raw = pltpu.bitcast(pers, jnp.int32)
        # totally-ordered ("sortable") int32 view of the f32 persistence
        skey = jnp.where(raw < 0, raw ^ jnp.int32(0x7FFFFFFF), raw)
        # pack (low - idx) into the low bits: a single max then is an argmax with a
        # first-index tie-break (exact for exact ties; only perturbs sub-ulp near-ties)
        packed = (skey & jnp.int32(~low)) | (jnp.int32(low) - idx)
        return n, jnp.where(active, packed, NEG_KEY)

    n1, key1 = make_keys(b1, d1)
    n2, key2 = make_keys(b2, d2)
    k = jnp.minimum(jnp.minimum(n1, n2), jnp.int32(TOPK))                # (1, Gt) int32

    acc = jnp.zeros((1, Gt), jnp.float32)
    w1, w2 = key1, key2
    for r in range(TOPK):                # unrolled; 4 sublane reductions per round
        m1 = jnp.max(w1, axis=0, keepdims=True)                          # XLU max (diag 1)
        m2 = jnp.max(w2, axis=0, keepdims=True)                          # XLU max (diag 2)
        sel1 = w1 == m1                                                  # one-hot per group
        sel2 = w2 == m2
        # combined-diagram differences: one sublane sum per coordinate, exact because
        # every non-selected row is exactly 0.
        db = jnp.sum(jnp.where(sel1, b1, 0.0) - jnp.where(sel2, b2, 0.0),
                     axis=0, keepdims=True)                              # XLU sum
        dd_ = jnp.sum(jnp.where(sel1, d1, 0.0) - jnp.where(sel2, d2, 0.0),
                      axis=0, keepdims=True)                             # XLU sum
        sq = db * db + dd_ * dd_                                         # (1, Gt)
        acc = acc + jnp.where(r < k, sq, 0.0)                            # rounds >= k masked
        w1 = jnp.where(sel1, NEG_KEY, w1)
        w2 = jnp.where(sel2, NEG_KEY, w2)

    k_f = jnp.maximum(k, 1).astype(jnp.float32)
    dist = jnp.where(k > 0, acc / k_f, 0.0)      # exact divide (review: drop approx recip)

    # lane-dense unmasked store: replicate the per-group distance over all 8 sublanes;
    # the wrapper divides the final sum by 8 (padded groups are exact zeros).
    wass_ref[...] = jnp.broadcast_to(dist, wass_ref.shape)


def topological_loss(features1, features2, diagrams1, diagrams2,
                     lambda_wasserstein=1.0, g_tile=None):
    f1 = features1.astype(jnp.float32)
    f2 = features2.astype(jnp.float32)
    # Feature MSE hoisted out of the kernel (review): tiny fused XLA elementwise+reduce.
    feature_loss = jnp.mean((f1 - f2) ** 2)

    B, D, P, _ = diagrams1.shape
    G = B * D
    P_pad = -(-P // 8) * 8                    # sublane multiple

    # ---- lane-tile (group-tile) selection --------------------------------------
    # vreg budget: ~6 live (P_pad, g_tile) arrays across the unrolled top-k loop:
    #   (P_pad/8) * (g_tile/128) * 6 <= 48 vregs   =>   g_tile <= 8192 / P_pad
    if g_tile is None:
        g_tile = 512
    vreg_cap = max(128, (8192 // P_pad) // 128 * 128)
    blocks128 = -(-G // 128)                  # 128-lane blocks needed to cover G
    g_tile = min(g_tile, vreg_cap, 128 * blocks128)
    if blocks128 >= 2:
        # v7x megacore: keep >= 2 parallel tiles so both TensorCores get work
        g_tile = min(g_tile, 128 * max(1, blocks128 // 2))
    g_tile = max(128, (g_tile // 128) * 128)
    num_tiles = pl.cdiv(G, g_tile)
    G_pad = num_tiles * g_tile

    def planarize(diag):
        # (B, D, P, 2) -> (2, P_pad, G_pad); padded points / groups are all-zero rows
        # and therefore treated as inactive inside the kernel.
        x = diag.astype(jnp.float32).reshape(G, P, 2)
        x = jnp.transpose(x, (2, 1, 0))                                  # (2, P, G)
        return jnp.pad(x, ((0, 0), (0, P_pad - P), (0, G_pad - G)))

    # Stack both diagrams and make the tile axis outermost: each grid step's block is
    # one contiguous HBM slab => a single DMA stream per step.
    dg = jnp.stack([planarize(diagrams1), planarize(diagrams2)], axis=0)  # (2,2,Pp,Gp)
    dg = dg.reshape(2, 2, P_pad, num_tiles, g_tile)
    dg = jnp.transpose(dg, (3, 0, 1, 2, 4))       # (num_tiles, 2, 2, P_pad, g_tile)

    wass_p = pl.pallas_call(
        _topo_wass_kernel,
        out_shape=jax.ShapeDtypeStruct((num_tiles * 8, g_tile), jnp.float32),
        grid=(num_tiles,),
        in_specs=[pl.BlockSpec((1, 2, 2, P_pad, g_tile),
                               lambda i: (i, 0, 0, 0, 0))],
        out_specs=pl.BlockSpec((8, g_tile), lambda i: (i, 0)),
        compiler_params=pltpu.CompilerParams(
            dimension_semantics=("parallel",),
            vmem_limit_bytes=32 * 1024 * 1024),   # tiles are tiny; stays inside v7x cap
    )(dg)

    # Final tiny reductions in the wrapper. Each group's distance is replicated over
    # 8 sublanes (hence /8); padded groups contribute exact zeros.
    wass = jnp.sum(wass_p) / (8.0 * G)
    return feature_loss + lambda_wasserstein * wass


def _reference_numpy(features1, features2, diagrams1, diagrams2, lam=1.0):
    f1 = np.asarray(features1, np.float32)
    f2 = np.asarray(features2, np.float32)
    mse = np.mean((f1 - f2) ** 2)
    D1 = np.asarray(diagrams1, np.float32)
    D2 = np.asarray(diagrams2, np.float32)
    B, D, P, _ = D1.shape
    total = 0.0
    for b in range(B):
        for d in range(D):
            p1 = D1[b, d]
            p2 = D2[b, d]
            a1 = p1[~np.all(p1 == 0, axis=1)]
            a2 = p2[~np.all(p2 == 0, axis=1)]
            if len(a1) == 0 or len(a2) == 0:
                continue
            per1 = a1[:, 1] - a1[:, 0]
            per2 = a2[:, 1] - a2[:, 0]
            s1 = a1[np.argsort(-per1, kind="stable")]
            s2 = a2[np.argsort(-per2, kind="stable")]
            kk = min(len(s1), len(s2), TOPK)
            t1 = s1[:kk]
            t2 = s2[:kk]
            total += np.mean(np.sum((t1 - t2) ** 2, axis=1))
    return mse + lam * total / (B * D)


if __name__ == "__main__":
    B, F, D, P = 2, 32, 3, 16  # batch, feature_dim, num_dimensions, max_points

    key = jax.random.PRNGKey(0)
    k1, k2, k3, k4, k5, k6 = jax.random.split(key, 6)

    features1 = jax.random.normal(k1, (B, F), jnp.float32)
    features2 = jax.random.normal(k2, (B, F), jnp.float32)

    diag1 = jax.random.uniform(k3, (B, D, P, 2), jnp.float32)
    diag2 = jax.random.uniform(k4, (B, D, P, 2), jnp.float32)
    # zero out some rows to emulate "inactive" persistence points
    m1 = (jax.random.uniform(k5, (B, D, P, 1)) > 0.3).astype(jnp.float32)
    m2 = (jax.random.uniform(k6, (B, D, P, 1)) > 0.3).astype(jnp.float32)
    diag1 = diag1 * m1
    diag2 = diag2 * m2

    loss = topological_loss(features1, features2, diag1, diag2, lambda_wasserstein=1.0)
    loss = jax.block_until_ready(loss)

    ref = _reference_numpy(features1, features2, diag1, diag2, lam=1.0)
    np.testing.assert_allclose(np.asarray(loss), ref, rtol=1e-3, atol=1e-5)

    print("KERNEL_OK")
</pallas_src>

<mosaic_0001>
module attributes {stable_mosaic.version = 11 : i64} {
  func.func @_topo_wass_kernel(%arg0: i32, %arg1: memref<1x2x2x16x128xf32, #tpu.memory_space<vmem>>, %arg2: memref<8x128xf32, #tpu.memory_space<vmem>>) attributes {dimension_semantics = [#tpu.dimension_semantics<parallel>], iteration_bounds = array<i64: 1>, scalar_prefetch = 0 : i64, scratch_operands = 0 : i64, tpu.core_type = #tpu.core_type<tc>, window_params = [{transform_indices = @transform_0, window_bounds = array<i64: 1, 2, 2, 16, 128>}, {transform_indices = @transform_1, window_bounds = array<i64: 8, 128>}]} {
    %c0 = arith.constant 0 : index
    %c0_0 = arith.constant 0 : index
    %c0_1 = arith.constant 0 : index
    %c0_2 = arith.constant 0 : index
    %c0_3 = arith.constant 0 : index
    %0 = vector.load %arg1[%c0, %c0_0, %c0_1, %c0_2, %c0_3] : memref<1x2x2x16x128xf32, #tpu.memory_space<vmem>>, vector<1x1x1x16x128xf32>
    %1 = vector.shape_cast %0 : vector<1x1x1x16x128xf32> to vector<16x128xf32>
    %c0_4 = arith.constant 0 : index
    %c0_5 = arith.constant 0 : index
    %c1 = arith.constant 1 : index
    %c0_6 = arith.constant 0 : index
    %c0_7 = arith.constant 0 : index
    %2 = vector.load %arg1[%c0_4, %c0_5, %c1, %c0_6, %c0_7] : memref<1x2x2x16x128xf32, #tpu.memory_space<vmem>>, vector<1x1x1x16x128xf32>
    %3 = vector.shape_cast %2 : vector<1x1x1x16x128xf32> to vector<16x128xf32>
    %c0_8 = arith.constant 0 : index
    %c1_9 = arith.constant 1 : index
    %c0_10 = arith.constant 0 : index
    %c0_11 = arith.constant 0 : index
    %c0_12 = arith.constant 0 : index
    %4 = vector.load %arg1[%c0_8, %c1_9, %c0_10, %c0_11, %c0_12] : memref<1x2x2x16x128xf32, #tpu.memory_space<vmem>>, vector<1x1x1x16x128xf32>
    %5 = vector.shape_cast %4 : vector<1x1x1x16x128xf32> to vector<16x128xf32>
    %c0_13 = arith.constant 0 : index
    %c1_14 = arith.constant 1 : index
    %c1_15 = arith.constant 1 : index
    %c0_16 = arith.constant 0 : index
    %c0_17 = arith.constant 0 : index
    %6 = vector.load %arg1[%c0_13, %c1_14, %c1_15, %c0_16, %c0_17] : memref<1x2x2x16x128xf32, #tpu.memory_space<vmem>>, vector<1x1x1x16x128xf32>
    %7 = vector.shape_cast %6 : vector<1x1x1x16x128xf32> to vector<16x128xf32>
    %8 = tpu.iota {dimensions = array<i32: 0>} : vector<16x128xi32>
    %cst = arith.constant 0.000000e+00 : f32
    %9 = vector.broadcast %cst : f32 to vector<16x128xf32>
    %10 = arith.cmpf one, %1, %9 : vector<16x128xf32>
    %cst_18 = arith.constant 0.000000e+00 : f32
    %11 = vector.broadcast %cst_18 : f32 to vector<16x128xf32>
    %12 = arith.cmpf one, %3, %11 : vector<16x128xf32>
    %13 = arith.ori %10, %12 : vector<16x128xi1>
    %14 = arith.extui %13 : vector<16x128xi1> to vector<16x128xi32>
    %cst_19 = arith.constant dense<0> : vector<128xi32>
    %15 = vector.multi_reduction <add>, %14, %cst_19 [0] : vector<16x128xi32> to vector<128xi32>
    %16 = vector.shape_cast %15 : vector<128xi32> to vector<1x128xi32>
    %17 = arith.subf %3, %1 : vector<16x128xf32>
    %18 = tpu.bitcast %17 : vector<16x128xf32> -> vector<16x128xi32>
    %c0_i32 = arith.constant 0 : i32
    %19 = vector.broadcast %c0_i32 : i32 to vector<16x128xi32>
    %20 = arith.cmpi slt, %18, %19 : vector<16x128xi32>
    %c2147483647_i32 = arith.constant 2147483647 : i32
    %21 = vector.broadcast %c2147483647_i32 : i32 to vector<16x128xi32>
    %22 = arith.xori %18, %21 : vector<16x128xi32>
    %23 = arith.select %20, %22, %18 : vector<16x128xi1>, vector<16x128xi32>
    %c-16_i32 = arith.constant -16 : i32
    %24 = vector.broadcast %c-16_i32 : i32 to vector<16x128xi32>
    %25 = arith.andi %23, %24 : vector<16x128xi32>
    %c15_i32 = arith.constant 15 : i32
    %26 = vector.broadcast %c15_i32 : i32 to vector<16x128xi32>
    %27 = arith.subi %26, %8 : vector<16x128xi32>
    %28 = arith.ori %25, %27 : vector<16x128xi32>
    %c-2147483648_i32 = arith.constant -2147483648 : i32
    %29 = vector.broadcast %c-2147483648_i32 : i32 to vector<16x128xi32>
    %30 = arith.select %13, %28, %29 : vector<16x128xi1>, vector<16x128xi32>
    %cst_20 = arith.constant 0.000000e+00 : f32
    %31 = vector.broadcast %cst_20 : f32 to vector<16x128xf32>
    %32 = arith.cmpf one, %5, %31 : vector<16x128xf32>
    %cst_21 = arith.constant 0.000000e+00 : f32
    %33 = vector.broadcast %cst_21 : f32 to vector<16x128xf32>
    %34 = arith.cmpf one, %7, %33 : vector<16x128xf32>
    %35 = arith.ori %32, %34 : vector<16x128xi1>
    %36 = arith.extui %35 : vector<16x128xi1> to vector<16x128xi32>
    %cst_22 = arith.constant dense<0> : vector<128xi32>
    %37 = vector.multi_reduction <add>, %36, %cst_22 [0] : vector<16x128xi32> to vector<128xi32>
    %38 = vector.shape_cast %37 : vector<128xi32> to vector<1x128xi32>
    %39 = arith.subf %7, %5 : vector<16x128xf32>
    %40 = tpu.bitcast %39 : vector<16x128xf32> -> vector<16x128xi32>
    %c0_i32_23 = arith.constant 0 : i32
    %41 = vector.broadcast %c0_i32_23 : i32 to vector<16x128xi32>
    %42 = arith.cmpi slt, %40, %41 : vector<16x128xi32>
    %c2147483647_i32_24 = arith.constant 2147483647 : i32
    %43 = vector.broadcast %c2147483647_i32_24 : i32 to vector<16x128xi32>
    %44 = arith.xori %40, %43 : vector<16x128xi32>
    %45 = arith.select %42, %44, %40 : vector<16x128xi1>, vector<16x128xi32>
    %c-16_i32_25 = arith.constant -16 : i32
    %46 = vector.broadcast %c-16_i32_25 : i32 to vector<16x128xi32>
    %47 = arith.andi %45, %46 : vector<16x128xi32>
    %c15_i32_26 = arith.constant 15 : i32
    %48 = vector.broadcast %c15_i32_26 : i32 to vector<16x128xi32>
    %49 = arith.subi %48, %8 : vector<16x128xi32>
    %50 = arith.ori %47, %49 : vector<16x128xi32>
    %c-2147483648_i32_27 = arith.constant -2147483648 : i32
    %51 = vector.broadcast %c-2147483648_i32_27 : i32 to vector<16x128xi32>
    %52 = arith.select %35, %50, %51 : vector<16x128xi1>, vector<16x128xi32>
    %53 = arith.minsi %16, %38 : vector<1x128xi32>
    %c10_i32 = arith.constant 10 : i32
    %54 = vector.broadcast %c10_i32 : i32 to vector<1x128xi32>
    %55 = arith.minsi %53, %54 : vector<1x128xi32>
    %cst_28 = arith.constant 0.000000e+00 : f32
    %56 = vector.broadcast %cst_28 : f32 to vector<1x128xf32>
    %cst_29 = arith.constant dense<-2147483648> : vector<128xi32>
    %57 = vector.multi_reduction <maxsi>, %30, %cst_29 [0] : vector<16x128xi32> to vector<128xi32>
    %58 = vector.shape_cast %57 : vector<128xi32> to vector<1x128xi32>
    %cst_30 = arith.constant dense<-2147483648> : vector<128xi32>
    %59 = vector.multi_reduction <maxsi>, %52, %cst_30 [0] : vector<16x128xi32> to vector<128xi32>
    %60 = vector.shape_cast %59 : vector<128xi32> to vector<1x128xi32>
    %61 = vector.broadcast %58 : vector<1x128xi32> to vector<16x128xi32>
    %62 = arith.cmpi eq, %30, %61 : vector<16x128xi32>
    %63 = vector.broadcast %60 : vector<1x128xi32> to vector<16x128xi32>
    %64 = arith.cmpi eq, %52, %63 : vector<16x128xi32>
    %cst_31 = arith.constant 0.000000e+00 : f32
    %65 = vector.broadcast %cst_31 : f32 to vector<16x128xf32>
    %66 = arith.select %62, %1, %65 : vector<16x128xi1>, vector<16x128xf32>
    %cst_32 = arith.constant 0.000000e+00 : f32
    %67 = vector.broadcast %cst_32 : f32 to vector<16x128xf32>
    %68 = arith.select %64, %5, %67 : vector<16x128xi1>, vector<16x128xf32>
    %69 = arith.subf %66, %68 : vector<16x128xf32>
    %cst_33 = arith.constant dense<0.000000e+00> : vector<128xf32>
    %70 = vector.multi_reduction <add>, %69, %cst_33 [0] : vector<16x128xf32> to vector<128xf32>
    %71 = vector.shape_cast %70 : vector<128xf32> to vector<1x128xf32>
    %cst_34 = arith.constant 0.000000e+00 : f32
    %72 = vector.broadcast %cst_34 : f32 to vector<16x128xf32>
    %73 = arith.select %62, %3, %72 : vector<16x128xi1>, vector<16x128xf32>
    %cst_35 = arith.constant 0.000000e+00 : f32
    %74 = vector.broadcast %cst_35 : f32 to vector<16x128xf32>
    %75 = arith.select %64, %7, %74 : vector<16x128xi1>, vector<16x128xf32>
    %76 = arith.subf %73, %75 : vector<16x128xf32>
    %cst_36 = arith.constant dense<0.000000e+00> : vector<128xf32>
    %77 = vector.multi_reduction <add>, %76, %cst_36 [0] : vector<16x128xf32> to vector<128xf32>
    %78 = vector.shape_cast %77 : vector<128xf32> to vector<1x128xf32>
    %79 = arith.mulf %71, %71 : vector<1x128xf32>
    %80 = arith.mulf %78, %78 : vector<1x128xf32>
    %81 = arith.addf %79, %80 : vector<1x128xf32>
    %c0_i32_37 = arith.constant 0 : i32
    %82 = vector.broadcast %c0_i32_37 : i32 to vector<1x128xi32>
    %83 = arith.cmpi sgt, %55, %82 : vector<1x128xi32>
    %cst_38 = arith.constant 0.000000e+00 : f32
    %84 = vector.broadcast %cst_38 : f32 to vector<1x128xf32>
    %85 = arith.select %83, %81, %84 : vector<1x128xi1>, vector<1x128xf32>
    %86 = arith.addf %56, %85 : vector<1x128xf32>
    %c-2147483648_i32_39 = arith.constant -2147483648 : i32
    %87 = vector.broadcast %c-2147483648_i32_39 : i32 to vector<16x128xi32>
    %88 = arith.select %62, %87, %30 : vector<16x128xi1>, vector<16x128xi32>
    %c-2147483648_i32_40 = arith.constant -2147483648 : i32
    %89 = vector.broadcast %c-2147483648_i32_40 : i32 to vector<16x128xi32>
    %90 = arith.select %64, %89, %52 : vector<16x128xi1>, vector<16x128xi32>
    %cst_41 = arith.constant dense<-2147483648> : vector<128xi32>
    %91 = vector.multi_reduction <maxsi>, %88, %cst_41 [0] : vector<16x128xi32> to vector<128xi32>
    %92 = vector.shape_cast %91 : vector<128xi32> to vector<1x128xi32>
    %cst_42 = arith.constant dense<-2147483648> : vector<128xi32>
    %93 = vector.multi_reduction <maxsi>, %90, %cst_42 [0] : vector<16x128xi32> to vector<128xi32>
    %94 = vector.shape_cast %93 : vector<128xi32> to vector<1x128xi32>
    %95 = vector.broadcast %92 : vector<1x128xi32> to vector<16x128xi32>
    %96 = arith.cmpi eq, %88, %95 : vector<16x128xi32>
    %97 = vector.broadcast %94 : vector<1x128xi32> to vector<16x128xi32>
    %98 = arith.cmpi eq, %90, %97 : vector<16x128xi32>
    %cst_43 = arith.constant 0.000000e+00 : f32
    %99 = vector.broadcast %cst_43 : f32 to vector<16x128xf32>
    %100 = arith.select %96, %1, %99 : vector<16x128xi1>, vector<16x128xf32>
    %cst_44 = arith.constant 0.000000e+00 : f32
    %101 = vector.broadcast %cst_44 : f32 to vector<16x128xf32>
    %102 = arith.select %98, %5, %101 : vector<16x128xi1>, vector<16x128xf32>
    %103 = arith.subf %100, %102 : vector<16x128xf32>
    %cst_45 = arith.constant dense<0.000000e+00> : vector<128xf32>
    %104 = vector.multi_reduction <add>, %103, %cst_45 [0] : vector<16x128xf32> to vector<128xf32>
    %105 = vector.shape_cast %104 : vector<128xf32> to vector<1x128xf32>
    %cst_46 = arith.constant 0.000000e+00 : f32
    %106 = vector.broadcast %cst_46 : f32 to vector<16x128xf32>
    %107 = arith.select %96, %3, %106 : vector<16x128xi1>, vector<16x128xf32>
    %cst_47 = arith.constant 0.000000e+00 : f32
    %108 = vector.broadcast %cst_47 : f32 to vector<16x128xf32>
    %109 = arith.select %98, %7, %108 : vector<16x128xi1>, vector<16x128xf32>
    %110 = arith.subf %107, %109 : vector<16x128xf32>
    %cst_48 = arith.constant dense<0.000000e+00> : vector<128xf32>
    %111 = vector.multi_reduction <add>, %110, %cst_48 [0] : vector<16x128xf32> to vector<128xf32>
    %112 = vector.shape_cast %111 : vector<128xf32> to vector<1x128xf32>
    %113 = arith.mulf %105, %105 : vector<1x128xf32>
    %114 = arith.mulf %112, %112 : vector<1x128xf32>
    %115 = arith.addf %113, %114 : vector<1x128xf32>
    %c1_i32 = arith.constant 1 : i32
    %116 = vector.broadcast %c1_i32 : i32 to vector<1x128xi32>
    %117 = arith.cmpi sgt, %55, %116 : vector<1x128xi32>
    %cst_49 = arith.constant 0.000000e+00 : f32
    %118 = vector.broadcast %cst_49 : f32 to vector<1x128xf32>
    %119 = arith.select %117, %115, %118 : vector<1x128xi1>, vector<1x128xf32>
    %120 = arith.addf %86, %119 : vector<1x128xf32>
    %c-2147483648_i32_50 = arith.constant -2147483648 : i32
    %121 = vector.broadcast %c-2147483648_i32_50 : i32 to vector<16x128xi32>
    %122 = arith.select %96, %121, %88 : vector<16x128xi1>, vector<16x128xi32>
    %c-2147483648_i32_51 = arith.constant -2147483648 : i32
    %123 = vector.broadcast %c-2147483648_i32_51 : i32 to vector<16x128xi32>
    %124 = arith.select %98, %123, %90 : vector<16x128xi1>, vector<16x128xi32>
    %cst_52 = arith.constant dense<-2147483648> : vector<128xi32>
    %125 = vector.multi_reduction <maxsi>, %122, %cst_52 [0] : vector<16x128xi32> to vector<128xi32>
    %126 = vector.shape_cast %125 : vector<128xi32> to vector<1x128xi32>
    %cst_53 = arith.constant dense<-2147483648> : vector<128xi32>
    %127 = vector.multi_reduction <maxsi>, %124, %cst_53 [0] : vector<16x128xi32> to vector<128xi32>
    %128 = vector.shape_cast %127 : vector<128xi32> to vector<1x128xi32>
    %129 = vector.broadcast %126 : vector<1x128xi32> to vector<16x128xi32>
    %130 = arith.cmpi eq, %122, %129 : vector<16x128xi32>
    %131 = vector.broadcast %128 : vector<1x128xi32> to vector<16x128xi32>
    %132 = arith.cmpi eq, %124, %131 : vector<16x128xi32>
    %cst_54 = arith.constant 0.000000e+00 : f32
    %133 = vector.broadcast %cst_54 : f32 to vector<16x128xf32>
    %134 = arith.select %130, %1, %133 : vector<16x128xi1>, vector<16x128xf32>
    %cst_55 = arith.constant 0.000000e+00 : f32
    %135 = vector.broadcast %cst_55 : f32 to vector<16x128xf32>
    %136 = arith.select %132, %5, %135 : vector<16x128xi1>, vector<16x128xf32>
    %137 = arith.subf %134, %136 : vector<16x128xf32>
    %cst_56 = arith.constant dense<0.000000e+00> : vector<128xf32>
    %138 = vector.multi_reduction <add>, %137, %cst_56 [0] : vector<16x128xf32> to vector<128xf32>
    %139 = vector.shape_cast %138 : vector<128xf32> to vector<1x128xf32>
    %cst_57 = arith.constant 0.000000e+00 : f32
    %140 = vector.broadcast %cst_57 : f32 to vector<16x128xf32>
    %141 = arith.select %130, %3, %140 : vector<16x128xi1>, vector<16x128xf32>
    %cst_58 = arith.constant 0.000000e+00 : f32
    %142 = vector.broadcast %cst_58 : f32 to vector<16x128xf32>
    %143 = arith.select %132, %7, %142 : vector<16x128xi1>, vector<16x128xf32>
    %144 = arith.subf %141, %143 : vector<16x128xf32>
    %cst_59 = arith.constant dense<0.000000e+00> : vector<128xf32>
    %145 = vector.multi_reduction <add>, %144, %cst_59 [0] : vector<16x128xf32> to vector<128xf32>
    %146 = vector.shape_cast %145 : vector<128xf32> to vector<1x128xf32>
    %147 = arith.mulf %139, %139 : vector<1x128xf32>
    %148 = arith.mulf %146, %146 : vector<1x128xf32>
    %149 = arith.addf %147, %148 : vector<1x128xf32>
    %c2_i32 = arith.constant 2 : i32
    %150 = vector.broadcast %c2_i32 : i32 to vector<1x128xi32>
    %151 = arith.cmpi sgt, %55, %150 : vector<1x128xi32>
    %cst_60 = arith.constant 0.000000e+00 : f32
    %152 = vector.broadcast %cst_60 : f32 to vector<1x128xf32>
    %153 = arith.select %151, %149, %152 : vector<1x128xi1>, vector<1x128xf32>
    %154 = arith.addf %120, %153 : vector<1x128xf32>
    %c-2147483648_i32_61 = arith.constant -2147483648 : i32
    %155 = vector.broadcast %c-2147483648_i32_61 : i32 to vector<16x128xi32>
    %156 = arith.select %130, %155, %122 : vector<16x128xi1>, vector<16x128xi32>
    %c-2147483648_i32_62 = arith.constant -2147483648 : i32
    %157 = vector.broadcast %c-2147483648_i32_62 : i32 to vector<16x128xi32>
    %158 = arith.select %132, %157, %124 : vector<16x128xi1>, vector<16x128xi32>
    %cst_63 = arith.constant dense<-2147483648> : vector<128xi32>
    %159 = vector.multi_reduction <maxsi>, %156, %cst_63 [0] : vector<16x128xi32> to vector<128xi32>
    %160 = vector.shape_cast %159 : vector<128xi32> to vector<1x128xi32>
    %cst_64 = arith.constant dense<-2147483648> : vector<128xi32>
    %161 = vector.multi_reduction <maxsi>, %158, %cst_64 [0] : vector<16x128xi32> to vector<128xi32>
    %162 = vector.shape_cast %161 : vector<128xi32> to vector<1x128xi32>
    %163 = vector.broadcast %160 : vector<1x128xi32> to vector<16x128xi32>
    %164 = arith.cmpi eq, %156, %163 : vector<16x128xi32>
    %165 = vector.broadcast %162 : vector<1x128xi32> to vector<16x128xi32>
    %166 = arith.cmpi eq, %158, %165 : vector<16x128xi32>
    %cst_65 = arith.constant 0.000000e+00 : f32
    %167 = vector.broadcast %cst_65 : f32 to vector<16x128xf32>
    %168 = arith.select %164, %1, %167 : vector<16x128xi1>, vector<16x128xf32>
    %cst_66 = arith.constant 0.000000e+00 : f32
    %169 = vector.broadcast %cst_66 : f32 to vector<16x128xf32>
    %170 = arith.select %166, %5, %169 : vector<16x128xi1>, vector<16x128xf32>
    %171 = arith.subf %168, %170 : vector<16x128xf32>
    %cst_67 = arith.constant dense<0.000000e+00> : vector<128xf32>
    %172 = vector.multi_reduction <add>, %171, %cst_67 [0] : vector<16x128xf32> to vector<128xf32>
    %173 = vector.shape_cast %172 : vector<128xf32> to vector<1x128xf32>
    %cst_68 = arith.constant 0.000000e+00 : f32
    %174 = vector.broadcast %cst_68 : f32 to vector<16x128xf32>
    %175 = arith.select %164, %3, %174 : vector<16x128xi1>, vector<16x128xf32>
    %cst_69 = arith.constant 0.000000e+00 : f32
    %176 = vector.broadcast %cst_69 : f32 to vector<16x128xf32>
    %177 = arith.select %166, %7, %176 : vector<16x128xi1>, vector<16x128xf32>
    %178 = arith.subf %175, %177 : vector<16x128xf32>
    %cst_70 = arith.constant dense<0.000000e+00> : vector<128xf32>
    %179 = vector.multi_reduction <add>, %178, %cst_70 [0] : vector<16x128xf32> to vector<128xf32>
    %180 = vector.shape_cast %179 : vector<128xf32> to vector<1x128xf32>
    %181 = arith.mulf %173, %173 : vector<1x128xf32>
    %182 = arith.mulf %180, %180 : vector<1x128xf32>
    %183 = arith.addf %181, %182 : vector<1x128xf32>
    %c3_i32 = arith.constant 3 : i32
    %184 = vector.broadcast %c3_i32 : i32 to vector<1x128xi32>
    %185 = arith.cmpi sgt, %55, %184 : vector<1x128xi32>
    %cst_71 = arith.constant 0.000000e+00 : f32
    %186 = vector.broadcast %cst_71 : f32 to vector<1x128xf32>
    %187 = arith.select %185, %183, %186 : vector<1x128xi1>, vector<1x128xf32>
    %188 = arith.addf %154, %187 : vector<1x128xf32>
    %c-2147483648_i32_72 = arith.constant -2147483648 : i32
    %189 = vector.broadcast %c-2147483648_i32_72 : i32 to vector<16x128xi32>
    %190 = arith.select %164, %189, %156 : vector<16x128xi1>, vector<16x128xi32>
    %c-2147483648_i32_73 = arith.constant -2147483648 : i32
    %191 = vector.broadcast %c-2147483648_i32_73 : i32 to vector<16x128xi32>
    %192 = arith.select %166, %191, %158 : vector<16x128xi1>, vector<16x128xi32>
    %cst_74 = arith.constant dense<-2147483648> : vector<128xi32>
    %193 = vector.multi_reduction <maxsi>, %190, %cst_74 [0] : vector<16x128xi32> to vector<128xi32>
    %194 = vector.shape_cast %193 : vector<128xi32> to vector<1x128xi32>
    %cst_75 = arith.constant dense<-2147483648> : vector<128xi32>
    %195 = vector.multi_reduction <maxsi>, %192, %cst_75 [0] : vector<16x128xi32> to vector<128xi32>
    %196 = vector.shape_cast %195 : vector<128xi32> to vector<1x128xi32>
    %197 = vector.broadcast %194 : vector<1x128xi32> to vector<16x128xi32>
    %198 = arith.cmpi eq, %190, %197 : vector<16x128xi32>
    %199 = vector.broadcast %196 : vector<1x128xi32> to vector<16x128xi32>
    %200 = arith.cmpi eq, %192, %199 : vector<16x128xi32>
    %cst_76 = arith.constant 0.000000e+00 : f32
    %201 = vector.broadcast %cst_76 : f32 to vector<16x128xf32>
    %202 = arith.select %198, %1, %201 : vector<16x128xi1>, vector<16x128xf32>
    %cst_77 = arith.constant 0.000000e+00 : f32
    %203 = vector.broadcast %cst_77 : f32 to vector<16x128xf32>
    %204 = arith.select %200, %5, %203 : vector<16x128xi1>, vector<16x128xf32>
    %205 = arith.subf %202, %204 : vector<16x128xf32>
    %cst_78 = arith.constant dense<0.000000e+00> : vector<128xf32>
    %206 = vector.multi_reduction <add>, %205, %cst_78 [0] : vector<16x128xf32> to vector<128xf32>
    %207 = vector.shape_cast %206 : vector<128xf32> to vector<1x128xf32>
    %cst_79 = arith.constant 0.000000e+00 : f32
    %208 = vector.broadcast %cst_79 : f32 to vector<16x128xf32>
    %209 = arith.select %198, %3, %208 : vector<16x128xi1>, vector<16x128xf32>
    %cst_80 = arith.constant 0.000000e+00 : f32
    %210 = vector.broadcast %cst_80 : f32 to vector<16x128xf32>
    %211 = arith.select %200, %7, %210 : vector<16x128xi1>, vector<16x128xf32>
    %212 = arith.subf %209, %211 : vector<16x128xf32>
    %cst_81 = arith.constant dense<0.000000e+00> : vector<128xf32>
    %213 = vector.multi_reduction <add>, %212, %cst_81 [0] : vector<16x128xf32> to vector<128xf32>
    %214 = vector.shape_cast %213 : vector<128xf32> to vector<1x128xf32>
    %215 = arith.mulf %207, %207 : vector<1x128xf32>
    %216 = arith.mulf %214, %214 : vector<1x128xf32>
    %217 = arith.addf %215, %216 : vector<1x128xf32>
    %c4_i32 = arith.constant 4 : i32
    %218 = vector.broadcast %c4_i32 : i32 to vector<1x128xi32>
    %219 = arith.cmpi sgt, %55, %218 : vector<1x128xi32>
    %cst_82 = arith.constant 0.000000e+00 : f32
    %220 = vector.broadcast %cst_82 : f32 to vector<1x128xf32>
    %221 = arith.select %219, %217, %220 : vector<1x128xi1>, vector<1x128xf32>
    %222 = arith.addf %188, %221 : vector<1x128xf32>
    %c-2147483648_i32_83 = arith.constant -2147483648 : i32
    %223 = vector.broadcast %c-2147483648_i32_83 : i32 to vector<16x128xi32>
    %224 = arith.select %198, %223, %190 : vector<16x128xi1>, vector<16x128xi32>
    %c-2147483648_i32_84 = arith.constant -2147483648 : i32
    %225 = vector.broadcast %c-2147483648_i32_84 : i32 to vector<16x128xi32>
    %226 = arith.select %200, %225, %192 : vector<16x128xi1>, vector<16x128xi32>
    %cst_85 = arith.constant dense<-2147483648> : vector<128xi32>
    %227 = vector.multi_reduction <maxsi>, %224, %cst_85 [0] : vector<16x128xi32> to vector<128xi32>
    %228 = vector.shape_cast %227 : vector<128xi32> to vector<1x128xi32>
    %cst_86 = arith.constant dense<-2147483648> : vector<128xi32>
    %229 = vector.multi_reduction <maxsi>, %226, %cst_86 [0] : vector<16x128xi32> to vector<128xi32>
    %230 = vector.shape_cast %229 : vector<128xi32> to vector<1x128xi32>
    %231 = vector.broadcast %228 : vector<1x128xi32> to vector<16x128xi32>
    %232 = arith.cmpi eq, %224, %231 : vector<16x128xi32>
    %233 = vector.broadcast %230 : vector<1x128xi32> to vector<16x128xi32>
    %234 = arith.cmpi eq, %226, %233 : vector<16x128xi32>
    %cst_87 = arith.constant 0.000000e+00 : f32
    %235 = vector.broadcast %cst_87 : f32 to vector<16x128xf32>
    %236 = arith.select %232, %1, %235 : vector<16x128xi1>, vector<16x128xf32>
    %cst_88 = arith.constant 0.000000e+00 : f32
    %237 = vector.broadcast %cst_88 : f32 to vector<16x128xf32>
    %238 = arith.select %234, %5, %237 : vector<16x128xi1>, vector<16x128xf32>
    %239 = arith.subf %236, %238 : vector<16x128xf32>
    %cst_89 = arith.constant dense<0.000000e+00> : vector<128xf32>
    %240 = vector.multi_reduction <add>, %239, %cst_89 [0] : vector<16x128xf32> to vector<128xf32>
    %241 = vector.shape_cast %240 : vector<128xf32> to vector<1x128xf32>
    %cst_90 = arith.constant 0.000000e+00 : f32
    %242 = vector.broadcast %cst_90 : f32 to vector<16x128xf32>
    %243 = arith.select %232, %3, %242 : vector<16x128xi1>, vector<16x128xf32>
    %cst_91 = arith.constant 0.000000e+00 : f32
    %244 = vector.broadcast %cst_91 : f32 to vector<16x128xf32>
    %245 = arith.select %234, %7, %244 : vector<16x128xi1>, vector<16x128xf32>
    %246 = arith.subf %243, %245 : vector<16x128xf32>
    %cst_92 = arith.constant dense<0.000000e+00> : vector<128xf32>
    %247 = vector.multi_reduction <add>, %246, %cst_92 [0] : vector<16x128xf32> to vector<128xf32>
    %248 = vector.shape_cast %247 : vector<128xf32> to vector<1x128xf32>
    %249 = arith.mulf %241, %241 : vector<1x128xf32>
    %250 = arith.mulf %248, %248 : vector<1x128xf32>
    %251 = arith.addf %249, %250 : vector<1x128xf32>
    %c5_i32 = arith.constant 5 : i32
    %252 = vector.broadcast %c5_i32 : i32 to vector<1x128xi32>
    %253 = arith.cmpi sgt, %55, %252 : vector<1x128xi32>
    %cst_93 = arith.constant 0.000000e+00 : f32
    %254 = vector.broadcast %cst_93 : f32 to vector<1x128xf32>
    %255 = arith.select %253, %251, %254 : vector<1x128xi1>, vector<1x128xf32>
    %256 = arith.addf %222, %255 : vector<1x128xf32>
    %c-2147483648_i32_94 = arith.constant -2147483648 : i32
    %257 = vector.broadcast %c-2147483648_i32_94 : i32 to vector<16x128xi32>
    %258 = arith.select %232, %257, %224 : vector<16x128xi1>, vector<16x128xi32>
    %c-2147483648_i32_95 = arith.constant -2147483648 : i32
    %259 = vector.broadcast %c-2147483648_i32_95 : i32 to vector<16x128xi32>
    %260 = arith.select %234, %259, %226 : vector<16x128xi1>, vector<16x128xi32>
    %cst_96 = arith.constant dense<-2147483648> : vector<128xi32>
    %261 = vector.multi_reduction <maxsi>, %258, %cst_96 [0] : vector<16x128xi32> to vector<128xi32>
    %262 = vector.shape_cast %261 : vector<128xi32> to vector<1x128xi32>
    %cst_97 = arith.constant dense<-2147483648> : vector<128xi32>
    %263 = vector.multi_reduction <maxsi>, %260, %cst_97 [0] : vector<16x128xi32> to vector<128xi32>
    %264 = vector.shape_cast %263 : vector<128xi32> to vector<1x128xi32>
    %265 = vector.broadcast %262 : vector<1x128xi32> to vector<16x128xi32>
    %266 = arith.cmpi eq, %258, %265 : vector<16x128xi32>
    %267 = vector.broadcast %264 : vector<1x128xi32> to vector<16x128xi32>
    %268 = arith.cmpi eq, %260, %267 : vector<16x128xi32>
    %cst_98 = arith.constant 0.000000e+00 : f32
    %269 = vector.broadcast %cst_98 : f32 to vector<16x128xf32>
    %270 = arith.select %266, %1, %269 : vector<16x128xi1>, vector<16x128xf32>
    %cst_99 = arith.constant 0.000000e+00 : f32
    %271 = vector.broadcast %cst_99 : f32 to vector<16x128xf32>
    %272 = arith.select %268, %5, %271 : vector<16x128xi1>, vector<16x128xf32>
    %273 = arith.subf %270, %272 : vector<16x128xf32>
    %cst_100 = arith.constant dense<0.000000e+00> : vector<128xf32>
    %274 = vector.multi_reduction <add>, %273, %cst_100 [0] : vector<16x128xf32> to vector<128xf32>
    %275 = vector.shape_cast %274 : vector<128xf32> to vector<1x128xf32>
    %cst_101 = arith.constant 0.000000e+00 : f32
    %276 = vector.broadcast %cst_101 : f32 to vector<16x128xf32>
    %277 = arith.select %266, %3, %276 : vector<16x128xi1>, vector<16x128xf32>
    %cst_102 = arith.constant 0.000000e+00 : f32
    %278 = vector.broadcast %cst_102 : f32 to vector<16x128xf32>
    %279 = arith.select %268, %7, %278 : vector<16x128xi1>, vector<16x128xf32>
    %280 = arith.subf %277, %279 : vector<16x128xf32>
    %cst_103 = arith.constant dense<0.000000e+00> : vector<128xf32>
    %281 = vector.multi_reduction <add>, %280, %cst_103 [0] : vector<16x128xf32> to vector<128xf32>
    %282 = vector.shape_cast %281 : vector<128xf32> to vector<1x128xf32>
    %283 = arith.mulf %275, %275 : vector<1x128xf32>
    %284 = arith.mulf %282, %282 : vector<1x128xf32>
    %285 = arith.addf %283, %284 : vector<1x128xf32>
    %c6_i32 = arith.constant 6 : i32
    %286 = vector.broadcast %c6_i32 : i32 to vector<1x128xi32>
    %287 = arith.cmpi sgt, %55, %286 : vector<1x128xi32>
    %cst_104 = arith.constant 0.000000e+00 : f32
    %288 = vector.broadcast %cst_104 : f32 to vector<1x128xf32>
    %289 = arith.select %287, %285, %288 : vector<1x128xi1>, vector<1x128xf32>
    %290 = arith.addf %256, %289 : vector<1x128xf32>
    %c-2147483648_i32_105 = arith.constant -2147483648 : i32
    %291 = vector.broadcast %c-2147483648_i32_105 : i32 to vector<16x128xi32>
    %292 = arith.select %266, %291, %258 : vector<16x128xi1>, vector<16x128xi32>
    %c-2147483648_i32_106 = arith.constant -2147483648 : i32
    %293 = vector.broadcast %c-2147483648_i32_106 : i32 to vector<16x128xi32>
    %294 = arith.select %268, %293, %260 : vector<16x128xi1>, vector<16x128xi32>
    %cst_107 = arith.constant dense<-2147483648> : vector<128xi32>
    %295 = vector.multi_reduction <maxsi>, %292, %cst_107 [0] : vector<16x128xi32> to vector<128xi32>
    %296 = vector.shape_cast %295 : vector<128xi32> to vector<1x128xi32>
    %cst_108 = arith.constant dense<-2147483648> : vector<128xi32>
    %297 = vector.multi_reduction <maxsi>, %294, %cst_108 [0] : vector<16x128xi32> to vector<128xi32>
    %298 = vector.shape_cast %297 : vector<128xi32> to vector<1x128xi32>
    %299 = vector.broadcast %296 : vector<1x128xi32> to vector<16x128xi32>
    %300 = arith.cmpi eq, %292, %299 : vector<16x128xi32>
    %301 = vector.broadcast %298 : vector<1x128xi32> to vector<16x128xi32>
    %302 = arith.cmpi eq, %294, %301 : vector<16x128xi32>
    %cst_109 = arith.constant 0.000000e+00 : f32
    %303 = vector.broadcast %cst_109 : f32 to vector<16x128xf32>
    %304 = arith.select %300, %1, %303 : vector<16x128xi1>, vector<16x128xf32>
    %cst_110 = arith.constant 0.000000e+00 : f32
    %305 = vector.broadcast %cst_110 : f32 to vector<16x128xf32>
    %306 = arith.select %302, %5, %305 : vector<16x128xi1>, vector<16x128xf32>
    %307 = arith.subf %304, %306 : vector<16x128xf32>
    %cst_111 = arith.constant dense<0.000000e+00> : vector<128xf32>
    %308 = vector.multi_reduction <add>, %307, %cst_111 [0] : vector<16x128xf32> to vector<128xf32>
    %309 = vector.shape_cast %308 : vector<128xf32> to vector<1x128xf32>
    %cst_112 = arith.constant 0.000000e+00 : f32
    %310 = vector.broadcast %cst_112 : f32 to vector<16x128xf32>
    %311 = arith.select %300, %3, %310 : vector<16x128xi1>, vector<16x128xf32>
    %cst_113 = arith.constant 0.000000e+00 : f32
    %312 = vector.broadcast %cst_113 : f32 to vector<16x128xf32>
    %313 = arith.select %302, %7, %312 : vector<16x128xi1>, vector<16x128xf32>
    %314 = arith.subf %311, %313 : vector<16x128xf32>
    %cst_114 = arith.constant dense<0.000000e+00> : vector<128xf32>
    %315 = vector.multi_reduction <add>, %314, %cst_114 [0] : vector<16x128xf32> to vector<128xf32>
    %316 = vector.shape_cast %315 : vector<128xf32> to vector<1x128xf32>
    %317 = arith.mulf %309, %309 : vector<1x128xf32>
    %318 = arith.mulf %316, %316 : vector<1x128xf32>
    %319 = arith.addf %317, %318 : vector<1x128xf32>
    %c7_i32 = arith.constant 7 : i32
    %320 = vector.broadcast %c7_i32 : i32 to vector<1x128xi32>
    %321 = arith.cmpi sgt, %55, %320 : vector<1x128xi32>
    %cst_115 = arith.constant 0.000000e+00 : f32
    %322 = vector.broadcast %cst_115 : f32 to vector<1x128xf32>
    %323 = arith.select %321, %319, %322 : vector<1x128xi1>, vector<1x128xf32>
    %324 = arith.addf %290, %323 : vector<1x128xf32>
    %c-2147483648_i32_116 = arith.constant -2147483648 : i32
    %325 = vector.broadcast %c-2147483648_i32_116 : i32 to vector<16x128xi32>
    %326 = arith.select %300, %325, %292 : vector<16x128xi1>, vector<16x128xi32>
    %c-2147483648_i32_117 = arith.constant -2147483648 : i32
    %327 = vector.broadcast %c-2147483648_i32_117 : i32 to vector<16x128xi32>
    %328 = arith.select %302, %327, %294 : vector<16x128xi1>, vector<16x128xi32>
    %cst_118 = arith.constant dense<-2147483648> : vector<128xi32>
    %329 = vector.multi_reduction <maxsi>, %326, %cst_118 [0] : vector<16x128xi32> to vector<128xi32>
    %330 = vector.shape_cast %329 : vector<128xi32> to vector<1x128xi32>
    %cst_119 = arith.constant dense<-2147483648> : vector<128xi32>
    %331 = vector.multi_reduction <maxsi>, %328, %cst_119 [0] : vector<16x128xi32> to vector<128xi32>
    %332 = vector.shape_cast %331 : vector<128xi32> to vector<1x128xi32>
    %333 = vector.broadcast %330 : vector<1x128xi32> to vector<16x128xi32>
    %334 = arith.cmpi eq, %326, %333 : vector<16x128xi32>
    %335 = vector.broadcast %332 : vector<1x128xi32> to vector<16x128xi32>
    %336 = arith.cmpi eq, %328, %335 : vector<16x128xi32>
    %cst_120 = arith.constant 0.000000e+00 : f32
    %337 = vector.broadcast %cst_120 : f32 to vector<16x128xf32>
    %338 = arith.select %334, %1, %337 : vector<16x128xi1>, vector<16x128xf32>
    %cst_121 = arith.constant 0.000000e+00 : f32
    %339 = vector.broadcast %cst_121 : f32 to vector<16x128xf32>
    %340 = arith.select %336, %5, %339 : vector<16x128xi1>, vector<16x128xf32>
    %341 = arith.subf %338, %340 : vector<16x128xf32>
    %cst_122 = arith.constant dense<0.000000e+00> : vector<128xf32>
    %342 = vector.multi_reduction <add>, %341, %cst_122 [0] : vector<16x128xf32> to vector<128xf32>
    %343 = vector.shape_cast %342 : vector<128xf32> to vector<1x128xf32>
    %cst_123 = arith.constant 0.000000e+00 : f32
    %344 = vector.broadcast %cst_123 : f32 to vector<16x128xf32>
    %345 = arith.select %334, %3, %344 : vector<16x128xi1>, vector<16x128xf32>
    %cst_124 = arith.constant 0.000000e+00 : f32
    %346 = vector.broadcast %cst_124 : f32 to vector<16x128xf32>
    %347 = arith.select %336, %7, %346 : vector<16x128xi1>, vector<16x128xf32>
    %348 = arith.subf %345, %347 : vector<16x128xf32>
    %cst_125 = arith.constant dense<0.000000e+00> : vector<128xf32>
    %349 = vector.multi_reduction <add>, %348, %cst_125 [0] : vector<16x128xf32> to vector<128xf32>
    %350 = vector.shape_cast %349 : vector<128xf32> to vector<1x128xf32>
    %351 = arith.mulf %343, %343 : vector<1x128xf32>
    %352 = arith.mulf %350, %350 : vector<1x128xf32>
    %353 = arith.addf %351, %352 : vector<1x128xf32>
    %c8_i32 = arith.constant 8 : i32
    %354 = vector.broadcast %c8_i32 : i32 to vector<1x128xi32>
    %355 = arith.cmpi sgt, %55, %354 : vector<1x128xi32>
    %cst_126 = arith.constant 0.000000e+00 : f32
    %356 = vector.broadcast %cst_126 : f32 to vector<1x128xf32>
    %357 = arith.select %355, %353, %356 : vector<1x128xi1>, vector<1x128xf32>
    %358 = arith.addf %324, %357 : vector<1x128xf32>
    %c-2147483648_i32_127 = arith.constant -2147483648 : i32
    %359 = vector.broadcast %c-2147483648_i32_127 : i32 to vector<16x128xi32>
    %360 = arith.select %334, %359, %326 : vector<16x128xi1>, vector<16x128xi32>
    %c-2147483648_i32_128 = arith.constant -2147483648 : i32
    %361 = vector.broadcast %c-2147483648_i32_128 : i32 to vector<16x128xi32>
    %362 = arith.select %336, %361, %328 : vector<16x128xi1>, vector<16x128xi32>
    %cst_129 = arith.constant dense<-2147483648> : vector<128xi32>
    %363 = vector.multi_reduction <maxsi>, %360, %cst_129 [0] : vector<16x128xi32> to vector<128xi32>
    %364 = vector.shape_cast %363 : vector<128xi32> to vector<1x128xi32>
    %cst_130 = arith.constant dense<-2147483648> : vector<128xi32>
    %365 = vector.multi_reduction <maxsi>, %362, %cst_130 [0] : vector<16x128xi32> to vector<128xi32>
    %366 = vector.shape_cast %365 : vector<128xi32> to vector<1x128xi32>
    %367 = vector.broadcast %364 : vector<1x128xi32> to vector<16x128xi32>
    %368 = arith.cmpi eq, %360, %367 : vector<16x128xi32>
    %369 = vector.broadcast %366 : vector<1x128xi32> to vector<16x128xi32>
    %370 = arith.cmpi eq, %362, %369 : vector<16x128xi32>
    %cst_131 = arith.constant 0.000000e+00 : f32
    %371 = vector.broadcast %cst_131 : f32 to vector<16x128xf32>
    %372 = arith.select %368, %1, %371 : vector<16x128xi1>, vector<16x128xf32>
    %cst_132 = arith.constant 0.000000e+00 : f32
    %373 = vector.broadcast %cst_132 : f32 to vector<16x128xf32>
    %374 = arith.select %370, %5, %373 : vector<16x128xi1>, vector<16x128xf32>
    %375 = arith.subf %372, %374 : vector<16x128xf32>
    %cst_133 = arith.constant dense<0.000000e+00> : vector<128xf32>
    %376 = vector.multi_reduction <add>, %375, %cst_133 [0] : vector<16x128xf32> to vector<128xf32>
    %377 = vector.shape_cast %376 : vector<128xf32> to vector<1x128xf32>
    %cst_134 = arith.constant 0.000000e+00 : f32
    %378 = vector.broadcast %cst_134 : f32 to vector<16x128xf32>
    %379 = arith.select %368, %3, %378 : vector<16x128xi1>, vector<16x128xf32>
    %cst_135 = arith.constant 0.000000e+00 : f32
    %380 = vector.broadcast %cst_135 : f32 to vector<16x128xf32>
    %381 = arith.select %370, %7, %380 : vector<16x128xi1>, vector<16x128xf32>
    %382 = arith.subf %379, %381 : vector<16x128xf32>
    %cst_136 = arith.constant dense<0.000000e+00> : vector<128xf32>
    %383 = vector.multi_reduction <add>, %382, %cst_136 [0] : vector<16x128xf32> to vector<128xf32>
    %384 = vector.shape_cast %383 : vector<128xf32> to vector<1x128xf32>
    %385 = arith.mulf %377, %377 : vector<1x128xf32>
    %386 = arith.mulf %384, %384 : vector<1x128xf32>
    %387 = arith.addf %385, %386 : vector<1x128xf32>
    %c9_i32 = arith.constant 9 : i32
    %388 = vector.broadcast %c9_i32 : i32 to vector<1x128xi32>
    %389 = arith.cmpi sgt, %55, %388 : vector<1x128xi32>
    %cst_137 = arith.constant 0.000000e+00 : f32
    %390 = vector.broadcast %cst_137 : f32 to vector<1x128xf32>
    %391 = arith.select %389, %387, %390 : vector<1x128xi1>, vector<1x128xf32>
    %392 = arith.addf %358, %391 : vector<1x128xf32>
    %c1_i32_138 = arith.constant 1 : i32
    %393 = vector.broadcast %c1_i32_138 : i32 to vector<1x128xi32>
    %394 = arith.maxsi %55, %393 : vector<1x128xi32>
    %395 = arith.sitofp %394 : vector<1x128xi32> to vector<1x128xf32>
    %c0_i32_139 = arith.constant 0 : i32
    %396 = vector.broadcast %c0_i32_139 : i32 to vector<1x128xi32>
    %397 = arith.cmpi sgt, %55, %396 : vector<1x128xi32>
    %398 = arith.divf %392, %395 : vector<1x128xf32>
    %cst_140 = arith.constant 0.000000e+00 : f32
    %399 = vector.broadcast %cst_140 : f32 to vector<1x128xf32>
    %400 = arith.select %397, %398, %399 : vector<1x128xi1>, vector<1x128xf32>
    %401 = vector.shape_cast %400 : vector<1x128xf32> to vector<1x128xf32>
    %402 = vector.broadcast %401 : vector<1x128xf32> to vector<8x128xf32>
    %c0_141 = arith.constant 0 : index
    %c0_142 = arith.constant 0 : index
    %403 = vector.load %arg2[%c0_141, %c0_142] : memref<8x128xf32, #tpu.memory_space<vmem>>, vector<8x128xf32>
    tpu.vector_store %arg2[%c0_141, %c0_142], %402 {strides = array<i32>} : memref<8x128xf32, #tpu.memory_space<vmem>>, vector<8x128xf32>,
    return
  }
  func.func @transform_0(%arg0: i32) -> (i32, i32, i32, i32, i32) {
    %c0_i32 = arith.constant 0 : i32
    %c0_i32_0 = arith.constant 0 : i32
    %c0_i32_1 = arith.constant 0 : i32
    %c0_i32_2 = arith.constant 0 : i32
    %c0_i32_3 = arith.constant 0 : i32
    return %arg0, %c0_i32, %c0_i32_0, %c0_i32_1, %c0_i32_2 : i32, i32, i32, i32, i32
  }
  func.func @transform_1(%arg0: i32) -> (i32, i32) {
    %c0_i32 = arith.constant 0 : i32
    %c0_i32_0 = arith.constant 0 : i32
    return %arg0, %c0_i32 : i32, i32
  }
}

</mosaic_0001>

<llo_original>
// kernel: tpu_custom_call.1
$region0: #{tpu_custom_call.1}
  #allocation0 [shape = 'u32[]', space=smem, size = 0x4, offset = 0x4, fixed_abs, tag = 'smem constant byte address 0x4 - core index']
  #allocation1 [shape = 'u32[144,128]{1,0:T(1,128)}', space=vmem, size = 0x12000, scoped, tag = 'internal scratch']
  %s0 = inlined_call_operand.hbm [shape: f32[1,2,2,16,128], index: 0, kind: input, shape index: {}]
  %s1 = inlined_call_operand.hbm [shape: f32[8,128], index: 1, kind: output, shape index: {}]
  %s2 = sld [smem:[#allocation0]]
  $region18: #{tpu_custom_call.1} parent=0
    _
  %s4 = ssub.s32 1, %s2
  %s5 = scalar_select 0, %s4, %s2
  $region1: #{tpu_custom_call.1} parent=0
    #allocation2 [shape = 'u8[32768]{0}', space=vmem, size = 0x8000, scoped, tag = 'input window, operand 0, single buffered']
    #allocation3 [shape = 's32[1]{0}', space=sflag, size = 0x4, scoped, tag = 'scoped memory for tpu_custom_call.1']
    #allocation4 [shape = 's32[1]{0}', space=sflag, size = 0x4, scoped, tag = 'scoped memory for tpu_custom_call.1']
    #allocation5 [shape = 'u8[4096]{0}', space=vmem, size = 0x1000, scoped, tag = 'output window, operand 0, single buffered']
    %6 = vsyncpa [#allocation3], 0
    %7 = vsyncpa [#allocation4], 0
    // Predicated region
    $region2: #{tpu_custom_call.1} parent=1 // pred_check
      _
    $region3: #{tpu_custom_call.1} parent=1 // pred_check_branch
      %9 = sbr.rel (0) target = $region5
    $region4: #{tpu_custom_call.1} parent=1 // pred_region
      %s11 = ssub.s32 1024, 1024
      %12 = vsyncadd [#allocation3], %s11
      %s13 = sshll.u32 [#allocation2], 4
      %s14 = int_to_ptr.vmem [resolvable:$true] %s13
      %19 = dma.hbm_to_vmem [thread:$0]  %s0, 1024, %s14, [#allocation3], 128, 128, 8
    $region5: #{tpu_custom_call.1} parent=1 // pred_fallthru
      _
    // Predicated region
    $region6: #{tpu_custom_call.1} parent=1 // pred_check
      _
    $region7: #{tpu_custom_call.1} parent=1 // pred_check_branch
      %21 = sbr.rel (0) target = $region9
    $region8: #{tpu_custom_call.1} parent=1 // pred_region
      %22 = dma.done [#allocation3], 1024
    $region9: #{tpu_custom_call.1} parent=1 // pred_fallthru
      _
    %v23 = vld [vmem:[#allocation2] sm:$0xff]
    %v24 = vld [vmem:[#allocation2 + $0x8] sm:$0xff]
    %s25 = scalar_lea.vmem [#allocation2], 16
    %v26 = vld [vmem:[%s25] sm:$0xff]
    %v27 = vld [vmem:[%s25 + $0x8] sm:$0xff]
    %s28 = scalar_lea.vmem [#allocation2], 32
    %v29 = vld [vmem:[%s28] sm:$0xff]
    %v30 = vld [vmem:[%s28 + $0x8] sm:$0xff]
    %s31 = scalar_lea.vmem [#allocation2], 48
    %v32 = vld [vmem:[%s31] sm:$0xff]
    %v33 = vld [vmem:[%s31 + $0x8] sm:$0xff]
    %v34 = vlaneseq
    %v35 = vshrl.u32 %v34, 7
    %v36 = vadd.s32 %v35, 8
    %vm37 = vcmp.ne.f32.partialorder %v23, 0.0
    %vm38 = vcmp.ne.f32.partialorder %v24, 0.0
    %vm39 = vcmp.ne.f32.partialorder %v26, 0.0
    %vm40 = vcmp.ne.f32.partialorder %v27, 0.0
    %vm41 = vmor %vm37, %vm39
    %vm42 = vmor %vm38, %vm40
    %v43 = vsel %vm41, 1, 0
    %v44 = vsel %vm42, 1, 0
    %v45 = vadd.s32 %v43, %v44
    %v46 = vrot.slane %v45, 4
    %v47 = vadd.s32 %v45, %v46
    %v48 = vrot.slane %v47, 2
    %v49 = vadd.s32 %v47, %v48
    %v50 = vrot.slane %v49, 1
    %v51 = vadd.s32 %v49, %v50
    %v52 = vsub.f32 %v26, %v23
    %v53 = vsub.f32 %v27, %v24
    %vm56 = vcmp.lt.s32.totalorder %v52, 0
    %vm57 = vcmp.lt.s32.totalorder %v53, 0
    %v58 = vxor.u32 %v52, 2147483647
    %v59 = vxor.u32 %v53, 2147483647
    %v60 = vsel %vm56, %v58, %v52
    %v61 = vsel %vm57, %v59, %v53
    %v62 = vand.u32 %v60, 4294967280
    %v63 = vand.u32 %v61, 4294967280
    %v64 = vsub.s32 15, %v35
    %v65 = vsub.s32 15, %v36
    %v66 = vor.u32 %v62, %v64
    %v67 = vor.u32 %v63, %v65
    %v68 = vsel %vm41, %v66, 2147483648
    %v69 = vsel %vm42, %v67, 2147483648
    %vm70 = vcmp.ne.f32.partialorder %v29, 0.0
    %vm71 = vcmp.ne.f32.partialorder %v30, 0.0
    %vm72 = vcmp.ne.f32.partialorder %v32, 0.0
    %vm73 = vcmp.ne.f32.partialorder %v33, 0.0
    %vm74 = vmor %vm70, %vm72
    %vm75 = vmor %vm71, %vm73
    %v76 = vsel %vm74, 1, 0
    %v77 = vsel %vm75, 1, 0
    %v78 = vadd.s32 %v76, %v77
    %v79 = vrot.slane %v78, 4
    %v80 = vadd.s32 %v78, %v79
    %v81 = vrot.slane %v80, 2
    %v82 = vadd.s32 %v80, %v81
    %v83 = vrot.slane %v82, 1
    %v84 = vadd.s32 %v82, %v83
    %v85 = vsub.f32 %v32, %v29
    %v86 = vsub.f32 %v33, %v30
    %vm89 = vcmp.lt.s32.totalorder %v85, 0
    %vm90 = vcmp.lt.s32.totalorder %v86, 0
    %v91 = vxor.u32 %v85, 2147483647
    %v92 = vxor.u32 %v86, 2147483647
    %v93 = vsel %vm89, %v91, %v85
    %v94 = vsel %vm90, %v92, %v86
    %v95 = vand.u32 %v93, 4294967280
    %v96 = vand.u32 %v94, 4294967280
    %v97 = vor.u32 %v95, %v64
    %v98 = vor.u32 %v96, %v65
    %v99 = vsel %vm74, %v97, 2147483648
    %v100 = vsel %vm75, %v98, 2147483648
    %vm101 = vcmp.lt.s32.totalorder %v51, %v84
    %v102 = vsel %vm101, %v51, %v84
    %vm103 = vcmp.lt.s32.totalorder %v102, 10
    %v104 = vsel %vm103, %v102, 10
    %vm105 = vcmp.gt.s32.totalorder %v68, %v69
    %v106 = vsel %vm105, %v68, %v69
    %v107 = vrot.slane %v106, 4
    %vm108 = vcmp.gt.s32.totalorder %v106, %v107
    %v109 = vsel %vm108, %v106, %v107
    %v110 = vrot.slane %v109, 2
    %vm111 = vcmp.gt.s32.totalorder %v109, %v110
    %v112 = vsel %vm111, %v109, %v110
    %v113 = vrot.slane %v112, 1
    %vm114 = vcmp.gt.s32.totalorder %v112, %v113
    %v115 = vsel %vm114, %v112, %v113
    %vm116 = vcmp.gt.s32.totalorder %v99, %v100
    %v117 = vsel %vm116, %v99, %v100
    %v118 = vrot.slane %v117, 4
    %vm119 = vcmp.gt.s32.totalorder %v117, %v118
    %v120 = vsel %vm119, %v117, %v118
    %v121 = vrot.slane %v120, 2
    %vm122 = vcmp.gt.s32.totalorder %v120, %v121
    %v123 = vsel %vm122, %v120, %v121
    %v124 = vrot.slane %v123, 1
    %vm125 = vcmp.gt.s32.totalorder %v123, %v124
    %v126 = vsel %vm125, %v123, %v124
    %vm127 = vcmp.eq.s32.totalorder %v68, %v115
    %vm128 = vcmp.eq.s32.totalorder %v69, %v115
    %vm129 = vcmp.eq.s32.totalorder %v99, %v126
    %vm130 = vcmp.eq.s32.totalorder %v100, %v126
    %v131 = vsel %vm127, %v23, 0.0
    %v132 = vsel %vm128, %v24, 0.0
    %v133 = vsel %vm129, %v29, 0.0
    %v134 = vsel %vm130, %v30, 0.0
    %v135 = vsub.f32 %v131, %v133
    %v136 = vsub.f32 %v132, %v134
    %v137 = vadd.f32 %v135, %v136
    %v138 = vrot.slane %v137, 4
    %v139 = vadd.f32 %v137, %v138
    %v140 = vrot.slane %v139, 2
    %v141 = vadd.f32 %v139, %v140
    %v142 = vrot.slane %v141, 1
    %v143 = vadd.f32 %v141, %v142
    %v144 = vsel %vm127, %v26, 0.0
    %v145 = vsel %vm128, %v27, 0.0
    %v146 = vsel %vm129, %v32, 0.0
    %v147 = vsel %vm130, %v33, 0.0
    %v148 = vsub.f32 %v144, %v146
    %v149 = vsub.f32 %v145, %v147
    %v150 = vadd.f32 %v148, %v149
    %v151 = vrot.slane %v150, 4
    %v152 = vadd.f32 %v150, %v151
    %v153 = vrot.slane %v152, 2
    %v154 = vadd.f32 %v152, %v153
    %v155 = vrot.slane %v154, 1
    %v156 = vadd.f32 %v154, %v155
    %v157 = vmul.f32 %v143, %v143
    %v158 = vmul.f32 %v156, %v156
    %v159 = vadd.f32 %v157, %v158
    %vm160 = vcmp.gt.s32.totalorder %v104, 0
    %v161 = vsel %vm160, %v159, 0.0
    %v162 = vadd.f32 %v161, 0.0
    %v163 = vsel %vm127, 2147483648, %v68
    %v164 = vsel %vm128, 2147483648, %v69
    %v165 = vsel %vm129, 2147483648, %v99
    %v166 = vsel %vm130, 2147483648, %v100
    %vm167 = vcmp.gt.s32.totalorder %v163, %v164
    %v168 = vsel %vm167, %v163, %v164
    %v169 = vrot.slane %v168, 4
    %vm170 = vcmp.gt.s32.totalorder %v168, %v169
    %v171 = vsel %vm170, %v168, %v169
    %v172 = vrot.slane %v171, 2
    %vm173 = vcmp.gt.s32.totalorder %v171, %v172
    %v174 = vsel %vm173, %v171, %v172
    %v175 = vrot.slane %v174, 1
    %vm176 = vcmp.gt.s32.totalorder %v174, %v175
    %v177 = vsel %vm176, %v174, %v175
    %vm178 = vcmp.gt.s32.totalorder %v165, %v166
    %v179 = vsel %vm178, %v165, %v166
    %v180 = vrot.slane %v179, 4
    %vm181 = vcmp.gt.s32.totalorder %v179, %v180
    %v182 = vsel %vm181, %v179, %v180
    %v183 = vrot.slane %v182, 2
    %vm184 = vcmp.gt.s32.totalorder %v182, %v183
    %v185 = vsel %vm184, %v182, %v183
    %v186 = vrot.slane %v185, 1
    %vm187 = vcmp.gt.s32.totalorder %v185, %v186
    %v188 = vsel %vm187, %v185, %v186
    %vm189 = vcmp.eq.s32.totalorder %v163, %v177
    %vm190 = vcmp.eq.s32.totalorder %v164, %v177
    %vm191 = vcmp.eq.s32.totalorder %v165, %v188
    %vm192 = vcmp.eq.s32.totalorder %v166, %v188
    %v193 = vsel %vm189, %v23, 0.0
    %v194 = vsel %vm190, %v24, 0.0
    %v195 = vsel %vm191, %v29, 0.0
    %v196 = vsel %vm192, %v30, 0.0
    %v197 = vsub.f32 %v193, %v195
    %v198 = vsub.f32 %v194, %v196
    %v199 = vadd.f32 %v197, %v198
    %v200 = vrot.slane %v199, 4
    %v201 = vadd.f32 %v199, %v200
    %v202 = vrot.slane %v201, 2
    %v203 = vadd.f32 %v201, %v202
    %v204 = vrot.slane %v203, 1
    %v205 = vadd.f32 %v203, %v204
    %v206 = vsel %vm189, %v26, 0.0
    %v207 = vsel %vm190, %v27, 0.0
    %v208 = vsel %vm191, %v32, 0.0
    %v209 = vsel %vm192, %v33, 0.0
    %v210 = vsub.f32 %v206, %v208
    %v211 = vsub.f32 %v207, %v209
    %v212 = vadd.f32 %v210, %v211
    %v213 = vrot.slane %v212, 4
    %v214 = vadd.f32 %v212, %v213
    %v215 = vrot.slane %v214, 2
    %v216 = vadd.f32 %v214, %v215
    %v217 = vrot.slane %v216, 1
    %v218 = vadd.f32 %v216, %v217
    %v219 = vmul.f32 %v205, %v205
    %v220 = vmul.f32 %v218, %v218
    %v221 = vadd.f32 %v219, %v220
    %vm222 = vcmp.gt.s32.totalorder %v104, 1
    %v223 = vsel %vm222, %v221, 0.0
    %v224 = vadd.f32 %v162, %v223
    %v225 = vsel %vm189, 2147483648, %v163
    %v226 = vsel %vm190, 2147483648, %v164
    %v227 = vsel %vm191, 2147483648, %v165
    %v228 = vsel %vm192, 2147483648, %v166
    %vm229 = vcmp.gt.s32.totalorder %v225, %v226
    %v230 = vsel %vm229, %v225, %v226
    %v231 = vrot.slane %v230, 4
    %vm232 = vcmp.gt.s32.totalorder %v230, %v231
    %v233 = vsel %vm232, %v230, %v231
    %v234 = vrot.slane %v233, 2
    %vm235 = vcmp.gt.s32.totalorder %v233, %v234
    %v236 = vsel %vm235, %v233, %v234
    %v237 = vrot.slane %v236, 1
    %vm238 = vcmp.gt.s32.totalorder %v236, %v237
    %v239 = vsel %vm238, %v236, %v237
    %vm240 = vcmp.gt.s32.totalorder %v227, %v228
    %v241 = vsel %vm240, %v227, %v228
    %v242 = vrot.slane %v241, 4
    %vm243 = vcmp.gt.s32.totalorder %v241, %v242
    %v244 = vsel %vm243, %v241, %v242
    %v245 = vrot.slane %v244, 2
    %vm246 = vcmp.gt.s32.totalorder %v244, %v245
    %v247 = vsel %vm246, %v244, %v245
    %v248 = vrot.slane %v247, 1
    %vm249 = vcmp.gt.s32.totalorder %v247, %v248
    %v250 = vsel %vm249, %v247, %v248
    %vm251 = vcmp.eq.s32.totalorder %v225, %v239
    %vm252 = vcmp.eq.s32.totalorder %v226, %v239
    %vm253 = vcmp.eq.s32.totalorder %v227, %v250
    %vm254 = vcmp.eq.s32.totalorder %v228, %v250
    %v255 = vsel %vm251, %v23, 0.0
    %v256 = vsel %vm252, %v24, 0.0
    %v257 = vsel %vm253, %v29, 0.0
    %v258 = vsel %vm254, %v30, 0.0
    %v259 = vsub.f32 %v255, %v257
    %v260 = vsub.f32 %v256, %v258
    %v261 = vadd.f32 %v259, %v260
    %v262 = vrot.slane %v261, 4
    %v263 = vadd.f32 %v261, %v262
    %v264 = vrot.slane %v263, 2
    %v265 = vadd.f32 %v263, %v264
    %v266 = vrot.slane %v265, 1
    %v267 = vadd.f32 %v265, %v266
    %v268 = vsel %vm251, %v26, 0.0
    %v269 = vsel %vm252, %v27, 0.0
    %v270 = vsel %vm253, %v32, 0.0
    %v271 = vsel %vm254, %v33, 0.0
    %v272 = vsub.f32 %v268, %v270
    %v273 = vsub.f32 %v269, %v271
    %v274 = vadd.f32 %v272, %v273
    %v275 = vrot.slane %v274, 4
    %v276 = vadd.f32 %v274, %v275
    %v277 = vrot.slane %v276, 2
    %v278 = vadd.f32 %v276, %v277
    %v279 = vrot.slane %v278, 1
    %v280 = vadd.f32 %v278, %v279
    %v281 = vmul.f32 %v267, %v267
    %v282 = vmul.f32 %v280, %v280
    %v283 = vadd.f32 %v281, %v282
    %vm284 = vcmp.gt.s32.totalorder %v104, 2
    %v285 = vsel %vm284, %v283, 0.0
    %v286 = vadd.f32 %v224, %v285
    %v287 = vsel %vm251, 2147483648, %v225
    %v288 = vsel %vm252, 2147483648, %v226
    %v289 = vsel %vm253, 2147483648, %v227
    %v290 = vsel %vm254, 2147483648, %v228
    %vm291 = vcmp.gt.s32.totalorder %v287, %v288
    %v292 = vsel %vm291, %v287, %v288
    %v293 = vrot.slane %v292, 4
    %vm294 = vcmp.gt.s32.totalorder %v292, %v293
    %v295 = vsel %vm294, %v292, %v293
    %v296 = vrot.slane %v295, 2
    %vm297 = vcmp.gt.s32.totalorder %v295, %v296
    %v298 = vsel %vm297, %v295, %v296
    %v299 = vrot.slane %v298, 1
    %vm300 = vcmp.gt.s32.totalorder %v298, %v299
    %v301 = vsel %vm300, %v298, %v299
    %vm302 = vcmp.gt.s32.totalorder %v289, %v290
    %v303 = vsel %vm302, %v289, %v290
    %v304 = vrot.slane %v303, 4
    %vm305 = vcmp.gt.s32.totalorder %v303, %v304
    %v306 = vsel %vm305, %v303, %v304
    %v307 = vrot.slane %v306, 2
    %vm308 = vcmp.gt.s32.totalorder %v306, %v307
    %v309 = vsel %vm308, %v306, %v307
    %v310 = vrot.slane %v309, 1
    %vm311 = vcmp.gt.s32.totalorder %v309, %v310
    %v312 = vsel %vm311, %v309, %v310
    %vm313 = vcmp.eq.s32.totalorder %v287, %v301
    %vm314 = vcmp.eq.s32.totalorder %v288, %v301
    %vm315 = vcmp.eq.s32.totalorder %v289, %v312
    %vm316 = vcmp.eq.s32.totalorder %v290, %v312
    %v317 = vsel %vm313, %v23, 0.0
    %v318 = vsel %vm314, %v24, 0.0
    %v319 = vsel %vm315, %v29, 0.0
    %v320 = vsel %vm316, %v30, 0.0
    %v321 = vsub.f32 %v317, %v319
    %v322 = vsub.f32 %v318, %v320
    %v323 = vadd.f32 %v321, %v322
    %v324 = vrot.slane %v323, 4
    %v325 = vadd.f32 %v323, %v324
    %v326 = vrot.slane %v325, 2
    %v327 = vadd.f32 %v325, %v326
    %v328 = vrot.slane %v327, 1
    %v329 = vadd.f32 %v327, %v328
    %v330 = vsel %vm313, %v26, 0.0
    %v331 = vsel %vm314, %v27, 0.0
    %v332 = vsel %vm315, %v32, 0.0
    %v333 = vsel %vm316, %v33, 0.0
    %v334 = vsub.f32 %v330, %v332
    %v335 = vsub.f32 %v331, %v333
    %v336 = vadd.f32 %v334, %v335
    %v337 = vrot.slane %v336, 4
    %v338 = vadd.f32 %v336, %v337
    %v339 = vrot.slane %v338, 2
    %v340 = vadd.f32 %v338, %v339
    %v341 = vrot.slane %v340, 1
    %v342 = vadd.f32 %v340, %v341
    %v343 = vmul.f32 %v329, %v329
    %v344 = vmul.f32 %v342, %v342
    %v345 = vadd.f32 %v343, %v344
    %vm346 = vcmp.gt.s32.totalorder %v104, 3
    %v347 = vsel %vm346, %v345, 0.0
    %v348 = vadd.f32 %v286, %v347
    %v349 = vsel %vm313, 2147483648, %v287
    %v350 = vsel %vm314, 2147483648, %v288
    %v351 = vsel %vm315, 2147483648, %v289
    %v352 = vsel %vm316, 2147483648, %v290
    %vm353 = vcmp.gt.s32.totalorder %v349, %v350
    %v354 = vsel %vm353, %v349, %v350
    %v355 = vrot.slane %v354, 4
    %vm356 = vcmp.gt.s32.totalorder %v354, %v355
    %v357 = vsel %vm356, %v354, %v355
    %v358 = vrot.slane %v357, 2
    %vm359 = vcmp.gt.s32.totalorder %v357, %v358
    %v360 = vsel %vm359, %v357, %v358
    %v361 = vrot.slane %v360, 1
    %vm362 = vcmp.gt.s32.totalorder %v360, %v361
    %v363 = vsel %vm362, %v360, %v361
    %vm364 = vcmp.gt.s32.totalorder %v351, %v352
    %v365 = vsel %vm364, %v351, %v352
    %v366 = vrot.slane %v365, 4
    %vm367 = vcmp.gt.s32.totalorder %v365, %v366
    %v368 = vsel %vm367, %v365, %v366
    %v369 = vrot.slane %v368, 2
    %vm370 = vcmp.gt.s32.totalorder %v368, %v369
    %v371 = vsel %vm370, %v368, %v369
    %v372 = vrot.slane %v371, 1
    %vm373 = vcmp.gt.s32.totalorder %v371, %v372
    %v374 = vsel %vm373, %v371, %v372
    %vm375 = vcmp.eq.s32.totalorder %v349, %v363
    %vm376 = vcmp.eq.s32.totalorder %v350, %v363
    %vm377 = vcmp.eq.s32.totalorder %v351, %v374
    %vm378 = vcmp.eq.s32.totalorder %v352, %v374
    %v379 = vsel %vm375, %v23, 0.0
    %v380 = vsel %vm376, %v24, 0.0
    %v381 = vsel %vm377, %v29, 0.0
    %v382 = vsel %vm378, %v30, 0.0
    %v383 = vsub.f32 %v379, %v381
    %v384 = vsub.f32 %v380, %v382
    %v385 = vadd.f32 %v383, %v384
    %v386 = vrot.slane %v385, 4
    %v387 = vadd.f32 %v385, %v386
    %v388 = vrot.slane %v387, 2
    %v389 = vadd.f32 %v387, %v388
    %v390 = vrot.slane %v389, 1
    %v391 = vadd.f32 %v389, %v390
    %v392 = vsel %vm375, %v26, 0.0
    %v393 = vsel %vm376, %v27, 0.0
    %v394 = vsel %vm377, %v32, 0.0
    %v395 = vsel %vm378, %v33, 0.0
    %v396 = vsub.f32 %v392, %v394
    %v397 = vsub.f32 %v393, %v395
    %v398 = vadd.f32 %v396, %v397
    %v399 = vrot.slane %v398, 4
    %v400 = vadd.f32 %v398, %v399
    %v401 = vrot.slane %v400, 2
    %v402 = vadd.f32 %v400, %v401
    %v403 = vrot.slane %v402, 1
    %v404 = vadd.f32 %v402, %v403
    %v405 = vmul.f32 %v391, %v391
    %v406 = vmul.f32 %v404, %v404
    %v407 = vadd.f32 %v405, %v406
    %vm408 = vcmp.gt.s32.totalorder %v104, 4
    %v409 = vsel %vm408, %v407, 0.0
    %v410 = vadd.f32 %v348, %v409
    %v411 = vsel %vm375, 2147483648, %v349
    %v412 = vsel %vm376, 2147483648, %v350
    %v413 = vsel %vm377, 2147483648, %v351
    %v414 = vsel %vm378, 2147483648, %v352
    %vm415 = vcmp.gt.s32.totalorder %v411, %v412
    %v416 = vsel %vm415, %v411, %v412
    %v417 = vrot.slane %v416, 4
    %vm418 = vcmp.gt.s32.totalorder %v416, %v417
    %v419 = vsel %vm418, %v416, %v417
    %v420 = vrot.slane %v419, 2
    %vm421 = vcmp.gt.s32.totalorder %v419, %v420
    %v422 = vsel %vm421, %v419, %v420
    %v423 = vrot.slane %v422, 1
    %vm424 = vcmp.gt.s32.totalorder %v422, %v423
    %v425 = vsel %vm424, %v422, %v423
    %vm426 = vcmp.gt.s32.totalorder %v413, %v414
    %v427 = vsel %vm426, %v413, %v414
    %v428 = vrot.slane %v427, 4
    %vm429 = vcmp.gt.s32.totalorder %v427, %v428
    %v430 = vsel %vm429, %v427, %v428
    %v431 = vrot.slane %v430, 2
    %vm432 = vcmp.gt.s32.totalorder %v430, %v431
    %v433 = vsel %vm432, %v430, %v431
    %v434 = vrot.slane %v433, 1
    %vm435 = vcmp.gt.s32.totalorder %v433, %v434
    %v436 = vsel %vm435, %v433, %v434
    %vm437 = vcmp.eq.s32.totalorder %v411, %v425
    %vm438 = vcmp.eq.s32.totalorder %v412, %v425
    %vm439 = vcmp.eq.s32.totalorder %v413, %v436
    %vm440 = vcmp.eq.s32.totalorder %v414, %v436
    %v441 = vsel %vm437, %v23, 0.0
    %v442 = vsel %vm438, %v24, 0.0
    %v443 = vsel %vm439, %v29, 0.0
    %v444 = vsel %vm440, %v30, 0.0
    %v445 = vsub.f32 %v441, %v443
    %v446 = vsub.f32 %v442, %v444
    %v447 = vadd.f32 %v445, %v446
    %v448 = vrot.slane %v447, 4
    %v449 = vadd.f32 %v447, %v448
    %v450 = vrot.slane %v449, 2
    %v451 = vadd.f32 %v449, %v450
    %v452 = vrot.slane %v451, 1
    %v453 = vadd.f32 %v451, %v452
    %v454 = vsel %vm437, %v26, 0.0
    %v455 = vsel %vm438, %v27, 0.0
    %v456 = vsel %vm439, %v32, 0.0
    %v457 = vsel %vm440, %v33, 0.0
    %v458 = vsub.f32 %v454, %v456
    %v459 = vsub.f32 %v455, %v457
    %v460 = vadd.f32 %v458, %v459
    %v461 = vrot.slane %v460, 4
    %v462 = vadd.f32 %v460, %v461
    %v463 = vrot.slane %v462, 2
    %v464 = vadd.f32 %v462, %v463
    %v465 = vrot.slane %v464, 1
    %v466 = vadd.f32 %v464, %v465
    %v467 = vmul.f32 %v453, %v453
    %v468 = vmul.f32 %v466, %v466
    %v469 = vadd.f32 %v467, %v468
    %vm470 = vcmp.gt.s32.totalorder %v104, 5
    %v471 = vsel %vm470, %v469, 0.0
    %v472 = vadd.f32 %v410, %v471
    %v473 = vsel %vm437, 2147483648, %v411
    %v474 = vsel %vm438, 2147483648, %v412
    %v475 = vsel %vm439, 2147483648, %v413
    %v476 = vsel %vm440, 2147483648, %v414
    %vm477 = vcmp.gt.s32.totalorder %v473, %v474
    %v478 = vsel %vm477, %v473, %v474
    %v479 = vrot.slane %v478, 4
    %vm480 = vcmp.gt.s32.totalorder %v478, %v479
    %v481 = vsel %vm480, %v478, %v479
    %v482 = vrot.slane %v481, 2
    %vm483 = vcmp.gt.s32.totalorder %v481, %v482
    %v484 = vsel %vm483, %v481, %v482
    %v485 = vrot.slane %v484, 1
    %vm486 = vcmp.gt.s32.totalorder %v484, %v485
    %v487 = vsel %vm486, %v484, %v485
    %vm488 = vcmp.gt.s32.totalorder %v475, %v476
    %v489 = vsel %vm488, %v475, %v476
    %v490 = vrot.slane %v489, 4
    %vm491 = vcmp.gt.s32.totalorder %v489, %v490
    %v492 = vsel %vm491, %v489, %v490
    %v493 = vrot.slane %v492, 2
    %vm494 = vcmp.gt.s32.totalorder %v492, %v493
    %v495 = vsel %vm494, %v492, %v493
    %v496 = vrot.slane %v495, 1
    %vm497 = vcmp.gt.s32.totalorder %v495, %v496
    %v498 = vsel %vm497, %v495, %v496
    %vm499 = vcmp.eq.s32.totalorder %v473, %v487
    %vm500 = vcmp.eq.s32.totalorder %v474, %v487
    %vm501 = vcmp.eq.s32.totalorder %v475, %v498
    %vm502 = vcmp.eq.s32.totalorder %v476, %v498
    %v503 = vsel %vm499, %v23, 0.0
    %v504 = vsel %vm500, %v24, 0.0
    %v505 = vsel %vm501, %v29, 0.0
    %v506 = vsel %vm502, %v30, 0.0
    %v507 = vsub.f32 %v503, %v505
    %v508 = vsub.f32 %v504, %v506
    %v509 = vadd.f32 %v507, %v508
    %v510 = vrot.slane %v509, 4
    %v511 = vadd.f32 %v509, %v510
    %v512 = vrot.slane %v511, 2
    %v513 = vadd.f32 %v511, %v512
    %v514 = vrot.slane %v513, 1
    %v515 = vadd.f32 %v513, %v514
    %v516 = vsel %vm499, %v26, 0.0
    %v517 = vsel %vm500, %v27, 0.0
    %v518 = vsel %vm501, %v32, 0.0
    %v519 = vsel %vm502, %v33, 0.0
    %v520 = vsub.f32 %v516, %v518
    %v521 = vsub.f32 %v517, %v519
    %v522 = vadd.f32 %v520, %v521
    %v523 = vrot.slane %v522, 4
    %v524 = vadd.f32 %v522, %v523
    %v525 = vrot.slane %v524, 2
    %v526 = vadd.f32 %v524, %v525
    %v527 = vrot.slane %v526, 1
    %v528 = vadd.f32 %v526, %v527
    %v529 = vmul.f32 %v515, %v515
    %v530 = vmul.f32 %v528, %v528
    %v531 = vadd.f32 %v529, %v530
    %vm532 = vcmp.gt.s32.totalorder %v104, 6
    %v533 = vsel %vm532, %v531, 0.0
    %v534 = vadd.f32 %v472, %v533
    %v535 = vsel %vm499, 2147483648, %v473
    %v536 = vsel %vm500, 2147483648, %v474
    %v537 = vsel %vm501, 2147483648, %v475
    %v538 = vsel %vm502, 2147483648, %v476
    %vm539 = vcmp.gt.s32.totalorder %v535, %v536
    %v540 = vsel %vm539, %v535, %v536
    %v541 = vrot.slane %v540, 4
    %vm542 = vcmp.gt.s32.totalorder %v540, %v541
    %v543 = vsel %vm542, %v540, %v541
    %v544 = vrot.slane %v543, 2
    %vm545 = vcmp.gt.s32.totalorder %v543, %v544
    %v546 = vsel %vm545, %v543, %v544
    %v547 = vrot.slane %v546, 1
    %vm548 = vcmp.gt.s32.totalorder %v546, %v547
    %v549 = vsel %vm548, %v546, %v547
    %vm550 = vcmp.gt.s32.totalorder %v537, %v538
    %v551 = vsel %vm550, %v537, %v538
    %v552 = vrot.slane %v551, 4
    %vm553 = vcmp.gt.s32.totalorder %v551, %v552
    %v554 = vsel %vm553, %v551, %v552
    %v555 = vrot.slane %v554, 2
    %vm556 = vcmp.gt.s32.totalorder %v554, %v555
    %v557 = vsel %vm556, %v554, %v555
    %v558 = vrot.slane %v557, 1
    %vm559 = vcmp.gt.s32.totalorder %v557, %v558
    %v560 = vsel %vm559, %v557, %v558
    %vm561 = vcmp.eq.s32.totalorder %v535, %v549
    %vm562 = vcmp.eq.s32.totalorder %v536, %v549
    %vm563 = vcmp.eq.s32.totalorder %v537, %v560
    %vm564 = vcmp.eq.s32.totalorder %v538, %v560
    %v565 = vsel %vm561, %v23, 0.0
    %v566 = vsel %vm562, %v24, 0.0
    %v567 = vsel %vm563, %v29, 0.0
    %v568 = vsel %vm564, %v30, 0.0
    %v569 = vsub.f32 %v565, %v567
    %v570 = vsub.f32 %v566, %v568
    %v571 = vadd.f32 %v569, %v570
    %v572 = vrot.slane %v571, 4
    %v573 = vadd.f32 %v571, %v572
    %v574 = vrot.slane %v573, 2
    %v575 = vadd.f32 %v573, %v574
    %v576 = vrot.slane %v575, 1
    %v577 = vadd.f32 %v575, %v576
    %v578 = vsel %vm561, %v26, 0.0
    %v579 = vsel %vm562, %v27, 0.0
    %v580 = vsel %vm563, %v32, 0.0
    %v581 = vsel %vm564, %v33, 0.0
    %v582 = vsub.f32 %v578, %v580
    %v583 = vsub.f32 %v579, %v581
    %v584 = vadd.f32 %v582, %v583
    %v585 = vrot.slane %v584, 4
    %v586 = vadd.f32 %v584, %v585
    %v587 = vrot.slane %v586, 2
    %v588 = vadd.f32 %v586, %v587
    %v589 = vrot.slane %v588, 1
    %v590 = vadd.f32 %v588, %v589
    %v591 = vmul.f32 %v577, %v577
    %v592 = vmul.f32 %v590, %v590
    %v593 = vadd.f32 %v591, %v592
    %vm594 = vcmp.gt.s32.totalorder %v104, 7
    %v595 = vsel %vm594, %v593, 0.0
    %v596 = vadd.f32 %v534, %v595
    %v597 = vsel %vm561, 2147483648, %v535
    %v598 = vsel %vm562, 2147483648, %v536
    %v599 = vsel %vm563, 2147483648, %v537
    %v600 = vsel %vm564, 2147483648, %v538
    %vm601 = vcmp.gt.s32.totalorder %v597, %v598
    %v602 = vsel %vm601, %v597, %v598
    %v603 = vrot.slane %v602, 4
    %vm604 = vcmp.gt.s32.totalorder %v602, %v603
    %v605 = vsel %vm604, %v602, %v603
    %v606 = vrot.slane %v605, 2
    %vm607 = vcmp.gt.s32.totalorder %v605, %v606
    %v608 = vsel %vm607, %v605, %v606
    %v609 = vrot.slane %v608, 1
    %vm610 = vcmp.gt.s32.totalorder %v608, %v609
    %v611 = vsel %vm610, %v608, %v609
    %vm612 = vcmp.gt.s32.totalorder %v599, %v600
    %v613 = vsel %vm612, %v599, %v600
    %v614 = vrot.slane %v613, 4
    %vm615 = vcmp.gt.s32.totalorder %v613, %v614
    %v616 = vsel %vm615, %v613, %v614
    %v617 = vrot.slane %v616, 2
    %vm618 = vcmp.gt.s32.totalorder %v616, %v617
    %v619 = vsel %vm618, %v616, %v617
    %v620 = vrot.slane %v619, 1
    %vm621 = vcmp.gt.s32.totalorder %v619, %v620
    %v622 = vsel %vm621, %v619, %v620
    %vm623 = vcmp.eq.s32.totalorder %v597, %v611
    %vm624 = vcmp.eq.s32.totalorder %v598, %v611
    %vm625 = vcmp.eq.s32.totalorder %v599, %v622
    %vm626 = vcmp.eq.s32.totalorder %v600, %v622
    %v627 = vsel %vm623, %v23, 0.0
    %v628 = vsel %vm624, %v24, 0.0
    %v629 = vsel %vm625, %v29, 0.0
    %v630 = vsel %vm626, %v30, 0.0
    %v631 = vsub.f32 %v627, %v629
    %v632 = vsub.f32 %v628, %v630
    %v633 = vadd.f32 %v631, %v632
    %v634 = vrot.slane %v633, 4
    %v635 = vadd.f32 %v633, %v634
    %v636 = vrot.slane %v635, 2
    %v637 = vadd.f32 %v635, %v636
    %v638 = vrot.slane %v637, 1
    %v639 = vadd.f32 %v637, %v638
    %v640 = vsel %vm623, %v26, 0.0
    %v641 = vsel %vm624, %v27, 0.0
    %v642 = vsel %vm625, %v32, 0.0
    %v643 = vsel %vm626, %v33, 0.0
    %v644 = vsub.f32 %v640, %v642
    %v645 = vsub.f32 %v641, %v643
    %v646 = vadd.f32 %v644, %v645
    %v647 = vrot.slane %v646, 4
    %v648 = vadd.f32 %v646, %v647
    %v649 = vrot.slane %v648, 2
    %v650 = vadd.f32 %v648, %v649
    %v651 = vrot.slane %v650, 1
    %v652 = vadd.f32 %v650, %v651
    %v653 = vmul.f32 %v639, %v639
    %v654 = vmul.f32 %v652, %v652
    %v655 = vadd.f32 %v653, %v654
    %vm656 = vcmp.gt.s32.totalorder %v104, 8
    %v657 = vsel %vm656, %v655, 0.0
    %v658 = vadd.f32 %v596, %v657
    %v659 = vsel %vm623, 2147483648, %v597
    %v660 = vsel %vm624, 2147483648, %v598
    %v661 = vsel %vm625, 2147483648, %v599
    %v662 = vsel %vm626, 2147483648, %v600
    %vm663 = vcmp.gt.s32.totalorder %v659, %v660
    %v664 = vsel %vm663, %v659, %v660
    %v665 = vrot.slane %v664, 4
    %vm666 = vcmp.gt.s32.totalorder %v664, %v665
    %v667 = vsel %vm666, %v664, %v665
    %v668 = vrot.slane %v667, 2
    %vm669 = vcmp.gt.s32.totalorder %v667, %v668
    %v670 = vsel %vm669, %v667, %v668
    %v671 = vrot.slane %v670, 1
    %vm672 = vcmp.gt.s32.totalorder %v670, %v671
    %v673 = vsel %vm672, %v670, %v671
    %vm674 = vcmp.gt.s32.totalorder %v661, %v662
    %v675 = vsel %vm674, %v661, %v662
    %v676 = vrot.slane %v675, 4
    %vm677 = vcmp.gt.s32.totalorder %v675, %v676
    %v678 = vsel %vm677, %v675, %v676
    %v679 = vrot.slane %v678, 2
    %vm680 = vcmp.gt.s32.totalorder %v678, %v679
    %v681 = vsel %vm680, %v678, %v679
    %v682 = vrot.slane %v681, 1
    %vm683 = vcmp.gt.s32.totalorder %v681, %v682
    %v684 = vsel %vm683, %v681, %v682
    %vm685 = vcmp.eq.s32.totalorder %v659, %v673
    %vm686 = vcmp.eq.s32.totalorder %v660, %v673
    %vm687 = vcmp.eq.s32.totalorder %v661, %v684
    %vm688 = vcmp.eq.s32.totalorder %v662, %v684
    %v689 = vsel %vm685, %v23, 0.0
    %v690 = vsel %vm686, %v24, 0.0
    %v691 = vsel %vm687, %v29, 0.0
    %v692 = vsel %vm688, %v30, 0.0
    %v693 = vsub.f32 %v689, %v691
    %v694 = vsub.f32 %v690, %v692
    %v695 = vadd.f32 %v693, %v694
    %v696 = vrot.slane %v695, 4
    %v697 = vadd.f32 %v695, %v696
    %v698 = vrot.slane %v697, 2
    %v699 = vadd.f32 %v697, %v698
    %v700 = vrot.slane %v699, 1
    %v701 = vadd.f32 %v699, %v700
    %v702 = vsel %vm685, %v26, 0.0
    %v703 = vsel %vm686, %v27, 0.0
    %v704 = vsel %vm687, %v32, 0.0
    %v705 = vsel %vm688, %v33, 0.0
    %v706 = vsub.f32 %v702, %v704
    %v707 = vsub.f32 %v703, %v705
    %v708 = vadd.f32 %v706, %v707
    %v709 = vrot.slane %v708, 4
    %v710 = vadd.f32 %v708, %v709
    %v711 = vrot.slane %v710, 2
    %v712 = vadd.f32 %v710, %v711
    %v713 = vrot.slane %v712, 1
    %v714 = vadd.f32 %v712, %v713
    %v715 = vmul.f32 %v701, %v701
    %v716 = vmul.f32 %v714, %v714
    %v717 = vadd.f32 %v715, %v716
    %vm718 = vcmp.gt.s32.totalorder %v104, 9
    %v719 = vsel %vm718, %v717, 0.0
    %v720 = vadd.f32 %v658, %v719
    %vm721 = vcmp.gt.s32.totalorder %v104, 1
    %v722 = vsel %vm721, %v104, 1
    %v723 = vcvt.s32.f32 %v722
    %v724 = vrcp.pop %v723
    %v725 = vmul.f32 %v720, %v724
    %v726 = vsel %vm160, %v725, 0.0
    %727 = vst [vmem:[#allocation5] sm:$0xff] %v726
    // Predicated region
    $region10: #{tpu_custom_call.1} parent=1 // pred_check
      _
    $region11: #{tpu_custom_call.1} parent=1 // pred_check_branch
      %729 = sbr.rel (0) target = $region13
    $region12: #{tpu_custom_call.1} parent=1 // pred_region
      %s731 = ssub.s32 128, 128
      %732 = vsyncadd [#allocation4], %s731
      %s734 = sshll.u32 [#allocation5], 4
      %s735 = int_to_ptr.vmem [resolvable:$true] %s734
      %737 = dma.vmem_to_hbm [thread:$0]  %s735, 128, %s1, [#allocation4]
    $region13: #{tpu_custom_call.1} parent=1 // pred_fallthru
      _
    // Predicated region
    $region14: #{tpu_custom_call.1} parent=1 // pred_check
      _
    $region15: #{tpu_custom_call.1} parent=1 // pred_check_branch
      %739 = sbr.rel (0) target = $region17
    $region16: #{tpu_custom_call.1} parent=1 // pred_region
      %740 = dma.done [#allocation4], 128
    $region17: #{tpu_custom_call.1} parent=1 // pred_fallthru
      _
    %741 = vsyncpa [#allocation3], 1
    %742 = vsyncpa [#allocation4], 1

</llo_original>
